<compile_context>
chip_gen: v7x
topology: tpu7x:2x2x1
jax: 0.10.0
libtpu: 0.0.40
codegen_flags: <defaults>
</compile_context>

<pallas_src>
import functools

import jax
import jax.numpy as jnp
from jax.experimental import pallas as pl
from jax.experimental.pallas import tpu as pltpu


LANE = 128      # lane (last-dim) tile width; K and N dims of every MXU matmul
SUBLANE = 8


# ------------------------- parameter / kernel setup (plain JAX glue) --------

def hippo_matrix(N):
    i = jnp.arange(N, dtype=jnp.float32)[:, None]
    j = jnp.arange(N, dtype=jnp.float32)[None, :]
    lower = -jnp.sqrt(2.0 * i + 1.0) * jnp.sqrt(2.0 * j + 1.0)
    return jnp.where(i > j, lower, jnp.where(i == j, -(i + 1.0), 0.0))


def dplr(A, rank=1):
    # TODO(synk): reference `dplr` uses undefined `A_tilde` / `rank`; we take
    # A_tilde = A - Lambda (off-diagonal part) and rank = 1 (standard S4 DPLR).
    Lambda = jnp.diag(jnp.diag(A))
    A_tilde = A - Lambda
    U, S, Vh = jnp.linalg.svd(A_tilde, full_matrices=False)
    P = U[:, :rank] * jnp.sqrt(S[:rank])
    Q = Vh[:rank, :].conj().T * jnp.sqrt(S[:rank])
    return Lambda, P, Q


def ssm_gen(delta, A, B, C, L):
    """Length-L SSM convolution kernel (time domain, real float32)."""
    N = A.shape[0]
    I = jnp.eye(N, dtype=jnp.float32)
    # TODO(synk): `Ad` is undefined in the reference; use the standard bilinear
    # discretization Ad = (I - delta/2 A)^{-1} (I + delta/2 A).
    Ad = jnp.linalg.solve(I - (delta / 2.0) * A, I + (delta / 2.0) * A)
    # TODO(synk): reference writes `Ad ** L` (elementwise in torch); the S4
    # truncation correction uses the matrix power, used here.
    AdL = jnp.linalg.matrix_power(Ad, L)
    Cts = (C.conj().T @ (I - AdL)).astype(jnp.complex64)          # (1, N)

    Lambda_mat, P, Q = dplr(A)
    lam = jnp.diag(Lambda_mat).astype(jnp.complex64)              # (N,)
    Pc = P.astype(jnp.complex64)                                  # (N, 1)
    Qc = Q.astype(jnp.complex64)                                  # (N, 1)
    Bc = B.astype(jnp.complex64)                                  # (N, 1)

    k = jnp.arange(L, dtype=jnp.float32)
    z = jnp.exp(2j * jnp.pi * k / L).astype(jnp.complex64)        # roots of unity
    omega = (2.0 / delta) * (1.0 - z) / (1.0 + z)                 # (L,)
    Rdiag = 1.0 / (omega[:, None] - lam[None, :])                 # (L, N) resolvent diag

    CtsR = Cts * Rdiag                                            # (L, N) = Cts @ R(z)
    QR = Qc.conj().T * Rdiag                                      # (L, N) = Q^H @ R(z)

    k00 = (CtsR @ Bc)[:, 0]
    k01 = (CtsR @ Pc)[:, 0]
    k10 = (QR @ Bc)[:, 0]
    k11 = (QR @ Pc)[:, 0]

    Kc = (2.0 / (1.0 + z)) * (k00 - k01 * (1.0 / (1.0 + k11)) * k10)
    if L % 2 == 0:
        # Nyquist node z = -1: omega and 2/(1+z) both blow up numerically; use
        # the finite analytic limit  2/(1+z) * R(z) -> (delta/2) * I  as z -> -1.
        kc_nyq = ((delta / 2.0) * (Cts @ Bc)[0, 0]).astype(Kc.dtype)
        Kc = Kc.at[L // 2].set(kc_nyq)
    # Kc[k] = sum_n Kd[n] exp(+2 pi i k n / L)  ->  Kd = FFT(Kc).real / L
    Kd = (jnp.fft.fft(Kc).real / L).astype(jnp.float32)           # (L,)
    return Kd


# ------------------------------- Pallas kernel -------------------------------

def _block_toeplitz_matmul_kernel(xs_ref, m_ref, o_ref, acc_ref, *, bq):
    """One (output row-block qi, block shift d) grid step.

    xs_ref : (1, bq, LANE)   bf16  X2 shifted down by d block-rows, rows
                                   [qi*bq, (qi+1)*bq) of that shifted matrix
    m_ref  : (1, LANE, LANE) bf16  block-Toeplitz tap block M[d]
    o_ref  : (bq, LANE)      f32   output row-block (resident across d)
    acc_ref: (bq, LANE)      f32   VMEM scratch accumulator
    """
    qi = pl.program_id(0)
    d = pl.program_id(1)

    @pl.when(d == 0)
    def _init():
        acc_ref[...] = jnp.zeros_like(acc_ref)

    # Causal skip: for block shift d every block-row k < d of the shifted X2
    # is zero, so if d exceeds the largest block-row of this output tile the
    # whole LHS tile is zero — skip the MXU work.
    @pl.when(d < (qi + 1) * bq)
    def _accumulate():
        acc_ref[...] += jnp.dot(xs_ref[0], m_ref[0],
                                preferred_element_type=jnp.float32)

    @pl.when(d == pl.num_programs(1) - 1)
    def _finalize():
        o_ref[...] = acc_ref[...].astype(o_ref.dtype)


def _pick_row_block(nb):
    """Largest power-of-two row-block (<=128, >=8) dividing nb that still
    leaves >=2 output tiles for the 'parallel' grid axis (megacore)."""
    for bq in (128, 64, 32, 16, 8):
        if nb % bq == 0 and nb // bq >= 2:
            return bq
    return nb


def causal_conv1d_block_toeplitz(x, kd, *, compute_dtype=jnp.bfloat16,
                                 use_pallas=True):
    """y[i] = sum_{j<=i} kd[i-j] * x[j] via a Pallas block-Toeplitz matmul."""
    L = x.shape[0]
    t = LANE
    lp = ((L + t * SUBLANE - 1) // (t * SUBLANE)) * (t * SUBLANE)   # nb % 8 == 0
    nb = lp // t
    bq = _pick_row_block(nb)

    x_pad = jnp.zeros((lp,), jnp.float32).at[:L].set(x.astype(jnp.float32))
    kd_pad = jnp.zeros((lp,), jnp.float32).at[:L].set(kd.astype(jnp.float32))
    x2 = x_pad.reshape(nb, t)

    # Block-Toeplitz tap blocks: M[d, b, a] = kd[d*t + a - b] (causal mask).
    # Only nb distinct (t, t) blocks — never the full lp x lp Toeplitz.
    d_idx = jnp.arange(nb, dtype=jnp.int32)[:, None, None]
    b_idx = jnp.arange(t, dtype=jnp.int32)[None, :, None]
    a_idx = jnp.arange(t, dtype=jnp.int32)[None, None, :]
    off = d_idx * t + a_idx - b_idx                                  # (nb, t, t)
    m_blocks = jnp.where(off >= 0, kd_pad[jnp.clip(off, 0, lp - 1)], 0.0)

    # Shifted copies of x2: xs[d, k, :] = x2[k - d, :]  (zero rows for k < d),
    # so the Pallas body stays a pure, statically-indexed MXU matmul.
    dd = jnp.arange(nb, dtype=jnp.int32)[:, None]
    kk = jnp.arange(nb, dtype=jnp.int32)[None, :]
    src = kk - dd
    xs = jnp.where((src >= 0)[:, :, None],
                   x2[jnp.clip(src, 0, nb - 1)], 0.0)                # (nb, nb, t)

    xs = xs.astype(compute_dtype)
    m_blocks = m_blocks.astype(compute_dtype)

    if not use_pallas:
        # Pure-JAX reference over the exact same (quantized) kernel inputs.
        y2 = jnp.einsum("dkt,dts->ks", xs.astype(jnp.float32),
                        m_blocks.astype(jnp.float32))
        return y2.reshape(lp)[:L]

    grid = (nb // bq, nb)   # (output row-blocks [parallel], shift d [reduction, last])
    y2 = pl.pallas_call(
        functools.partial(_block_toeplitz_matmul_kernel, bq=bq),
        out_shape=jax.ShapeDtypeStruct((nb, t), jnp.float32),
        grid_spec=pltpu.PrefetchScalarGridSpec(
            num_scalar_prefetch=0,
            grid=grid,
            in_specs=[
                pl.BlockSpec((1, bq, t), lambda qi, d: (d, qi, 0)),   # shifted x rows
                pl.BlockSpec((1, t, t), lambda qi, d: (d, 0, 0)),     # tap block M[d]
            ],
            out_specs=pl.BlockSpec((bq, t), lambda qi, d: (qi, 0)),   # accumulator
            scratch_shapes=[pltpu.VMEM((bq, t), jnp.float32)],
        ),
        compiler_params=pltpu.CompilerParams(
            dimension_semantics=("parallel", "arbitrary")),
    )(xs, m_blocks)

    return y2.reshape(lp)[:L]


def s4_conv1d_forward(x, A, B, C, delta=1.0):
    """Equivalent of S4Conv1D.forward: generate Kd, causally convolve with x.

    TODO(synk): reference forward returns an undefined `y`; we return the
    causal convolution of x with Kd (D = 0, so no skip term).
    """
    L = x.shape[0]
    kd = ssm_gen(delta, A, B, C, L)                               # (L,)
    return causal_conv1d_block_toeplitz(x, kd)


# ------------------------------------ main -----------------------------------

if __name__ == "__main__":
    N, F, delta = 3, 1, 1.0
    L = 2048                      # modest demo length; any L works (padded)

    key = jax.random.PRNGKey(0)
    kb, kc, kx = jax.random.split(key, 3)
    A = hippo_matrix(N)                                           # (3, 3)
    B = jax.random.normal(kb, (N, 1), dtype=jnp.float32)          # (3, 1)
    C = jax.random.normal(kc, (N, 1), dtype=jnp.float32)          # (3, 1)
    x = jax.random.normal(kx, (L,), dtype=jnp.float32)            # (2048,)

    y = s4_conv1d_forward(x, A, B, C, delta)
    y = jax.block_until_ready(y)
    assert y.shape == (L,)

    kd = ssm_gen(delta, A, B, C, L)

    def rel_l2(a, b):
        return float(jnp.linalg.norm(a - b) / (jnp.linalg.norm(b) + 1e-30))

    # Check 1 (tight): same quantized block-Toeplitz inputs, plain-JAX contraction.
    y_tight = causal_conv1d_block_toeplitz(x, kd, use_pallas=False)
    err_tight = rel_l2(y, y_tight)
    assert err_tight < 1e-3, f"kernel vs same-input reference: {err_tight}"

    # Check 2 (semantics, full f32): direct causal convolution with Kd.
    ii = jnp.arange(L)[:, None]
    jj = jnp.arange(L)[None, :]
    t_full = jnp.where(ii - jj >= 0, kd[jnp.clip(ii - jj, 0, L - 1)], 0.0)
    y_ref = (t_full * x[None, :]).sum(axis=1)
    err_sem = rel_l2(y, y_ref)
    assert err_sem < 2e-2, f"kernel vs f32 causal-conv reference: {err_sem}"

    print("KERNEL_OK")
</pallas_src>

<mosaic_0001>
module attributes {stable_mosaic.version = 11 : i64} {
  func.func @_block_toeplitz_matmul_kernel(%arg0: i32, %arg1: i32, %arg2: memref<1x8x128xbf16, #tpu.memory_space<vmem>>, %arg3: memref<1x128x128xbf16, #tpu.memory_space<vmem>>, %arg4: memref<8x128xf32, #tpu.memory_space<vmem>>, %arg5: memref<8x128xf32, #tpu.memory_space<vmem>>) attributes {dimension_semantics = [#tpu.dimension_semantics<parallel>, #tpu.dimension_semantics<arbitrary>], iteration_bounds = array<i64: 2, 16>, scalar_prefetch = 0 : i64, scratch_operands = 1 : i64, tpu.core_type = #tpu.core_type<tc>, window_params = [{transform_indices = @transform_0, window_bounds = array<i64: 1, 8, 128>}, {transform_indices = @transform_1, window_bounds = array<i64: 1, 128, 128>}, {transform_indices = @transform_2, window_bounds = array<i64: 8, 128>}]} {
    %c0_i32 = arith.constant 0 : i32
    %0 = arith.cmpi eq, %arg1, %c0_i32 : i32
    %1 = arith.extui %0 : i1 to i32
    %c0_i32_0 = arith.constant 0 : i32
    %2 = arith.cmpi ne, %1, %c0_i32_0 : i32
    scf.if %2 {
      %cst = arith.constant 0.000000e+00 : f32
      %11 = vector.broadcast %cst : f32 to vector<8x128xf32>
      %c0 = arith.constant 0 : index
      %c0_3 = arith.constant 0 : index
      %12 = vector.load %arg5[%c0, %c0_3] : memref<8x128xf32, #tpu.memory_space<vmem>>, vector<8x128xf32>
      tpu.vector_store %arg5[%c0, %c0_3], %11 {strides = array<i32>} : memref<8x128xf32, #tpu.memory_space<vmem>>, vector<8x128xf32>,
    } else {
    }
    %c1_i32 = arith.constant 1 : i32
    %3 = arith.addi %arg0, %c1_i32 : i32
    %c8_i32 = arith.constant 8 : i32
    %4 = arith.muli %3, %c8_i32 : i32
    %5 = arith.cmpi slt, %arg1, %4 : i32
    %6 = arith.extui %5 : i1 to i32
    %c0_i32_1 = arith.constant 0 : i32
    %7 = arith.cmpi ne, %6, %c0_i32_1 : i32
    scf.if %7 {
      %c0 = arith.constant 0 : index
      %c0_3 = arith.constant 0 : index
      %11 = vector.load %arg5[%c0, %c0_3] : memref<8x128xf32, #tpu.memory_space<vmem>>, vector<8x128xf32>
      %c0_4 = arith.constant 0 : index
      %c0_5 = arith.constant 0 : index
      %c0_6 = arith.constant 0 : index
      %12 = vector.load %arg2[%c0_4, %c0_5, %c0_6] : memref<1x8x128xbf16, #tpu.memory_space<vmem>>, vector<1x8x128xbf16>
      %13 = vector.shape_cast %12 : vector<1x8x128xbf16> to vector<8x128xbf16>
      %c0_7 = arith.constant 0 : index
      %c0_8 = arith.constant 0 : index
      %c0_9 = arith.constant 0 : index
      %14 = vector.load %arg3[%c0_7, %c0_8, %c0_9] : memref<1x128x128xbf16, #tpu.memory_space<vmem>>, vector<1x128x128xbf16>
      %15 = vector.shape_cast %14 : vector<1x128x128xbf16> to vector<128x128xbf16>
      %cst = arith.constant dense<0.000000e+00> : vector<8x128xf32>
      %16 = tpu.matmul %13, %15, %cst {dimension_numbers = #tpu.dot_dimension_numbers<[1], [0], [0], [1], [0, 0, 1, 1], [], []>} : vector<8x128xbf16>, vector<128x128xbf16>, vector<8x128xf32> -> vector<8x128xf32>
      %17 = arith.addf %11, %16 : vector<8x128xf32>
      %c0_10 = arith.constant 0 : index
      %c0_11 = arith.constant 0 : index
      %18 = vector.load %arg5[%c0_10, %c0_11] : memref<8x128xf32, #tpu.memory_space<vmem>>, vector<8x128xf32>
      tpu.vector_store %arg5[%c0_10, %c0_11], %17 {strides = array<i32>} : memref<8x128xf32, #tpu.memory_space<vmem>>, vector<8x128xf32>,
    } else {
    }
    %c15_i32 = arith.constant 15 : i32
    %8 = arith.cmpi eq, %arg1, %c15_i32 : i32
    %9 = arith.extui %8 : i1 to i32
    %c0_i32_2 = arith.constant 0 : i32
    %10 = arith.cmpi ne, %9, %c0_i32_2 : i32
    scf.if %10 {
      %c0 = arith.constant 0 : index
      %c0_3 = arith.constant 0 : index
      %11 = vector.load %arg5[%c0, %c0_3] : memref<8x128xf32, #tpu.memory_space<vmem>>, vector<8x128xf32>
      %c0_4 = arith.constant 0 : index
      %c0_5 = arith.constant 0 : index
      %12 = vector.load %arg4[%c0_4, %c0_5] : memref<8x128xf32, #tpu.memory_space<vmem>>, vector<8x128xf32>
      tpu.vector_store %arg4[%c0_4, %c0_5], %11 {strides = array<i32>} : memref<8x128xf32, #tpu.memory_space<vmem>>, vector<8x128xf32>,
    } else {
    }
    return
  }
  func.func @transform_0(%arg0: i32, %arg1: i32) -> (i32, i32, i32) {
    %c0_i32 = arith.constant 0 : i32
    %c0_i32_0 = arith.constant 0 : i32
    return %arg1, %arg0, %c0_i32 : i32, i32, i32
  }
  func.func @transform_1(%arg0: i32, %arg1: i32) -> (i32, i32, i32) {
    %c0_i32 = arith.constant 0 : i32
    %c0_i32_0 = arith.constant 0 : i32
    %c0_i32_1 = arith.constant 0 : i32
    return %arg1, %c0_i32, %c0_i32_0 : i32, i32, i32
  }
  func.func @transform_2(%arg0: i32, %arg1: i32) -> (i32, i32) {
    %c0_i32 = arith.constant 0 : i32
    %c0_i32_0 = arith.constant 0 : i32
    return %arg0, %c0_i32 : i32, i32
  }
}

</mosaic_0001>

<llo_original>
// kernel: tpu_custom_call.1
$region0: #{tpu_custom_call.1}
  #allocation0 [shape = 'u32[]', space=smem, size = 0x4, offset = 0x4, fixed_abs, tag = 'smem constant byte address 0x4 - core index']
  #allocation1 [shape = 'u32[144,128]{1,0:T(1,128)}', space=vmem, size = 0x12000, scoped, tag = 'internal scratch']
  #allocation2 [shape = 'f32[8,128]{1,0:T(8,128)}', space=vmem, size = 0x1000, scoped, tag = 'scratch operand']
  %s0 = inlined_call_operand.hbm [shape: bf16[16,16,128], index: 0, kind: input, shape index: {}]
  %s1 = inlined_call_operand.hbm [shape: bf16[16,128,128], index: 1, kind: input, shape index: {}]
  %s2 = inlined_call_operand.hbm [shape: f32[16,128], index: 2, kind: output, shape index: {}]
  %s3 = sld [smem:[#allocation0]]
  $region61: #{tpu_custom_call.1} parent=0
    _
  %s5 = ssub.s32 1, %s3
  %s6 = scalar_select 0, %s5, %s3
  $region1: #{tpu_custom_call.1} parent=0
    #allocation3 [shape = 'u8[4096]{0}', space=vmem, size = 0x1000, scoped, tag = 'input window, operand 0']
    #allocation4 [shape = 's32[2]{0}', space=sflag, size = 0x8, scoped, tag = 'scoped memory for tpu_custom_call.1']
    #allocation5 [shape = 's32[2]{0}', space=sflag, size = 0x8, scoped, tag = 'scoped memory for tpu_custom_call.1']
    #allocation6 [shape = 'u8[65536]{0}', space=vmem, size = 0x10000, scoped, tag = 'input window, operand 1']
    #allocation7 [shape = 's32[2]{0}', space=sflag, size = 0x8, scoped, tag = 'scoped memory for tpu_custom_call.1']
    #allocation8 [shape = 'u8[8192]{0}', space=vmem, size = 0x2000, scoped, tag = 'output window, operand 0']
    %7 = vsyncpa [#allocation4], 0
    %s8 = scalar_lea.sflag [#allocation4], 1
    %9 = vsyncpa %s8, 0
    %10 = vsyncpa [#allocation7], 0
    %s11 = scalar_lea.sflag [#allocation7], 1
    %12 = vsyncpa %s11, 0
    %13 = vsyncpa [#allocation5], 0
    %s14 = scalar_lea.sflag [#allocation5], 1
    %15 = vsyncpa %s14, 0
    loop: start=0, step=1, limit=34
    $region2: #{tpu_custom_call.1} parent=1 // loop_pre_header
      _
    $region3: #{tpu_custom_call.1} parent=1 // loop_header
      %s17 = sphi 0, %s21
      %p18 = scmp.ge.s32.totalorder %s17, 34
      %s24 = sphi 0, %s36
      %s25 = sphi 0, %s32
      %s26 = sphi 0, %s24
      %s27 = sphi 0, %s25
      %s28 = sphi 0, %s26
      %s29 = sphi 0, %s27
      %s41 = sphi 0, %s43
      %s44 = sphi 0, %s41
      %s45 = sphi 0, %s44
      %s61 = sphi 0, %s45
      %s67 = sphi 0, %s69
      %s70 = sphi 0, %s67
      %s71 = sphi 0, %s70
      %s87 = sphi 0, %s71
      %s93 = sphi 0, %s95
      %s96 = sphi 0, %s93
      %s97 = sphi 0, %s96
      %s113 = sphi 0, %s97
    $region4: #{tpu_custom_call.1} parent=1 // loop_header_branch
      %20 = sbr.rel (%p18) target = $region8
    $region5: #{tpu_custom_call.1} parent=1 // loop_body
      %s22 = ssub.s32 %s17, 1
      %s23 = ssub.s32 %s17, 2
      %s30 = sadd.s32 1, %s25
      %p31 = scmp.ge.s32.totalorder %s30, 16
      %s32 = scalar_select %p31, 0, %s30
      %s33 = sadd.s32 1, %s24
      %s34 = scalar_select %p31, %s33, %s24
      %p35 = scmp.ge.s32.totalorder %s34, 2
      %s36 = scalar_select %p35, 0, %s34
      %s37 = ssub.s32 %s25, %s32
      %s38 = ssub.s32 %s24, %s36
      %s39 = sor.u32 %s37, %s38
      %p40 = scmp.eq.s32.totalorder %s39, 0
      %s42 = sadd.s32 %s41, 1
      %s43 = scalar_select %p40, %s41, %s42
      %p46 = pneg %p40
      %p47 = scmp.eq.s32.totalorder %s17, 31
      %p48 = por %p46, %p47
      %p49 = scmp.ne.s32.totalorder %s41, %s44
      %p50 = scmp.eq.s32.totalorder %s17, 0
      %p51 = por %p49, %p50
      %p52 = scmp.ne.s32.totalorder %s41, %s44
      %p53 = scmp.eq.s32.totalorder %s22, 31
      %p54 = por %p52, %p53
      %p55 = scmp.ne.s32.totalorder %s44, %s45
      %p56 = scmp.eq.s32.totalorder %s22, 0
      %p57 = por %p55, %p56
      %p58 = scmp.ne.s32.totalorder %s44, %s45
      %p59 = scmp.eq.s32.totalorder %s23, 31
      %p60 = por %p58, %p59
      %p62 = scmp.ne.s32.totalorder %s45, %s61
      %p63 = scmp.eq.s32.totalorder %s23, 0
      %p64 = por %p62, %p63
      %s65 = ssub.s32 %s25, %s32
      %p66 = scmp.eq.s32.totalorder %s65, 0
      %s68 = sadd.s32 %s67, 1
      %s69 = scalar_select %p66, %s67, %s68
      %p72 = pneg %p66
      %p73 = scmp.eq.s32.totalorder %s17, 31
      %p74 = por %p72, %p73
      %p75 = scmp.ne.s32.totalorder %s67, %s70
      %p76 = scmp.eq.s32.totalorder %s17, 0
      %p77 = por %p75, %p76
      %p78 = scmp.ne.s32.totalorder %s67, %s70
      %p79 = scmp.eq.s32.totalorder %s22, 31
      %p80 = por %p78, %p79
      %p81 = scmp.ne.s32.totalorder %s70, %s71
      %p82 = scmp.eq.s32.totalorder %s22, 0
      %p83 = por %p81, %p82
      %p84 = scmp.ne.s32.totalorder %s70, %s71
      %p85 = scmp.eq.s32.totalorder %s23, 31
      %p86 = por %p84, %p85
      %p88 = scmp.ne.s32.totalorder %s71, %s87
      %p89 = scmp.eq.s32.totalorder %s23, 0
      %p90 = por %p88, %p89
      %s91 = ssub.s32 %s24, %s36
      %p92 = scmp.eq.s32.totalorder %s91, 0
      %s94 = sadd.s32 %s93, 1
      %s95 = scalar_select %p92, %s93, %s94
      %p98 = pneg %p92
      %p99 = scmp.eq.s32.totalorder %s17, 31
      %p100 = por %p98, %p99
      %p101 = scmp.ne.s32.totalorder %s93, %s96
      %p102 = scmp.eq.s32.totalorder %s17, 0
      %p103 = por %p101, %p102
      %p104 = scmp.ne.s32.totalorder %s93, %s96
      %p105 = scmp.eq.s32.totalorder %s22, 31
      %p106 = por %p104, %p105
      %p107 = scmp.ne.s32.totalorder %s96, %s97
      %p108 = scmp.eq.s32.totalorder %s22, 0
      %p109 = por %p107, %p108
      %p110 = scmp.ne.s32.totalorder %s96, %s97
      %p111 = scmp.eq.s32.totalorder %s23, 31
      %p112 = por %p110, %p111
      %p114 = scmp.ne.s32.totalorder %s97, %s113
      %p115 = scmp.eq.s32.totalorder %s23, 0
      %p116 = por %p114, %p115
      %p117 = scmp.le.s32.totalorder 1, %s17
      %p118 = scmp.lt.s32.totalorder %s17, 33
      %p119 = pnand %p117, %p118
      %p120 = pneg %p119
      // Predicated region
      $region9: #{tpu_custom_call.1} parent=5 // pred_check
        _
      $region10: #{tpu_custom_call.1} parent=5 // pred_check_branch
        %122 = sbr.rel (%p119) target = $region12
      $region11: #{tpu_custom_call.1} parent=5 // pred_region
        %s123 = ssub.s32 %s17, 1
      $region12: #{tpu_custom_call.1} parent=5 // pred_fallthru
        _
      %p124 = scmp.lt.s32.totalorder %s17, 32
      // Predicated region
      $region13: #{tpu_custom_call.1} parent=5 // pred_check
        %p125 = pneg %p124
      $region14: #{tpu_custom_call.1} parent=5 // pred_check_branch
        %127 = sbr.rel (%p125) target = $region16
      $region15: #{tpu_custom_call.1} parent=5 // pred_region
        // Predicated region
        $region17: #{tpu_custom_call.1} parent=15 // pred_check
          %p128 = pneg %p51
        $region18: #{tpu_custom_call.1} parent=15 // pred_check_branch
          %130 = sbr.rel (%p128) target = $region20
        $region19: #{tpu_custom_call.1} parent=15 // pred_region
          %s131 = sand.u32 %s41, 1
          %s132 = scalar_lea.sflag [#allocation4], %s131
          %s133 = sand.u32 %s41, 1
          %s134 = smul.addr %s133, 4
          %s135 = scalar_lea.vmem [#allocation3], %s134
          %s137 = ssub.s32 64, 64
          %138 = vsyncadd %s132, %s137
          %s139 = smul.addr %s25, 2
          %s140 = sadd.s32 %s24, %s139
          %s141 = smul.addr %s140, 64
          %s142 = scalar_lea.hbm %s0, %s141
          %s144 = sshll.u32 %s135, 4
          %s145 = int_to_ptr.vmem [resolvable:$true] %s144
          %147 = dma.hbm_to_vmem [thread:$0]  %s142, 64, %s145, %s132
        $region20: #{tpu_custom_call.1} parent=15 // pred_fallthru
          _
        // Predicated region
        $region21: #{tpu_custom_call.1} parent=15 // pred_check
          %p148 = pneg %p77
        $region22: #{tpu_custom_call.1} parent=15 // pred_check_branch
          %150 = sbr.rel (%p148) target = $region24
        $region23: #{tpu_custom_call.1} parent=15 // pred_region
          %s151 = sand.u32 %s67, 1
          %s152 = scalar_lea.sflag [#allocation7], %s151
          %s153 = sand.u32 %s67, 1
          %s154 = smul.addr %s153, 64
          %s155 = scalar_lea.vmem [#allocation6], %s154
          %s157 = ssub.s32 1024, 1024
          %158 = vsyncadd %s152, %s157
          %s159 = smul.addr %s25, 16
          %s160 = smul.addr %s159, 64
          %s161 = scalar_lea.hbm %s1, %s160
          %s162 = sshll.u32 %s155, 4
          %s163 = int_to_ptr.vmem [resolvable:$true] %s162
          %168 = dma.hbm_to_vmem [thread:$0]  %s161, 1024, %s163, %s152, 64, 64, 4
        $region24: #{tpu_custom_call.1} parent=15 // pred_fallthru
          _
      $region16: #{tpu_custom_call.1} parent=5 // pred_fallthru
        _
      %p169 = scmp.le.s32.totalorder 1, %s17
      %p170 = scmp.lt.s32.totalorder %s17, 33
      %p171 = pnand %p169, %p170
      %p172 = pneg %p171
      // Predicated region
      $region25: #{tpu_custom_call.1} parent=5 // pred_check
        _
      $region26: #{tpu_custom_call.1} parent=5 // pred_check_branch
        %174 = sbr.rel (%p171) target = $region28
      $region27: #{tpu_custom_call.1} parent=5 // pred_region
        %s175 = ssub.s32 %s17, 1
        %s176 = sand.u32 %s44, 1
        %s177 = scalar_lea.sflag [#allocation4], %s176
        %s178 = sand.u32 %s44, 1
        %s179 = smul.addr %s178, 4
        %s180 = scalar_lea.vmem [#allocation3], %s179
        // Predicated region
        $region29: #{tpu_custom_call.1} parent=27 // pred_check
          %p181 = pneg %p57
        $region30: #{tpu_custom_call.1} parent=27 // pred_check_branch
          %183 = sbr.rel (%p181) target = $region32
        $region31: #{tpu_custom_call.1} parent=27 // pred_region
          %184 = dma.done %s177, 64
        $region32: #{tpu_custom_call.1} parent=27 // pred_fallthru
          _
        %s185 = sand.u32 %s70, 1
        %s186 = scalar_lea.sflag [#allocation7], %s185
        %s187 = sand.u32 %s70, 1
        %s188 = smul.addr %s187, 64
        %s189 = scalar_lea.vmem [#allocation6], %s188
        // Predicated region
        $region33: #{tpu_custom_call.1} parent=27 // pred_check
          %p190 = pneg %p83
        $region34: #{tpu_custom_call.1} parent=27 // pred_check_branch
          %192 = sbr.rel (%p190) target = $region36
        $region35: #{tpu_custom_call.1} parent=27 // pred_region
          %193 = dma.done %s186, 1024
        $region36: #{tpu_custom_call.1} parent=27 // pred_fallthru
          _
        %s194 = sand.u32 %s44, 1
        %s195 = scalar_lea.sflag [#allocation4], %s194
        %s196 = sand.u32 %s44, 1
        %s197 = smul.addr %s196, 4
        %s198 = scalar_lea.vmem [#allocation3], %s197
        %p199 = pneg %p57
        %p200 = pneg %p54
        %s201 = sand.u32 %s70, 1
        %s202 = scalar_lea.sflag [#allocation7], %s201
        %s203 = sand.u32 %s70, 1
        %s204 = smul.addr %s203, 64
        %s205 = scalar_lea.vmem [#allocation6], %s204
        %p206 = pneg %p83
        %p207 = pneg %p80
        %p208 = pneg %p109
        %p209 = pneg %p106
        %s210 = sand.u32 %s96, 1
        %s211 = scalar_lea.sflag [#allocation5], %s210
        %s212 = sand.u32 %s96, 1
        %s213 = smul.addr %s212, 8
        %s214 = scalar_lea.vmem [#allocation8], %s213
        %p216 = scmp.eq.s32.totalorder %s27, 0
        // Predicated region
        $region37: #{tpu_custom_call.1} parent=27 // pred_check
          %p217 = pneg %p216
        $region38: #{tpu_custom_call.1} parent=27 // pred_check_branch
          %219 = sbr.rel (%p217) target = $region40
        $region39: #{tpu_custom_call.1} parent=27 // pred_region
          %220 = vst [vmem:[#allocation2] sm:$0xff] 0.0
        $region40: #{tpu_custom_call.1} parent=27 // pred_fallthru
          _
        %s221 = sadd.s32 %s26, 1
        %s222 = smul.u32 %s221, 8
        %p223 = scmp.lt.s32.totalorder %s27, %s222
        // Predicated region
        $region41: #{tpu_custom_call.1} parent=27 // pred_check
          %p224 = pneg %p223
        $region42: #{tpu_custom_call.1} parent=27 // pred_check_branch
          %226 = sbr.rel (%p224) target = $region44
        $region43: #{tpu_custom_call.1} parent=27 // pred_region
          %v227 = vld [vmem:[#allocation2] sm:$0xff]
          %v228 = vld [vmem:[%s180] sm:$0xf]
          %v229 = vld [vmem:[%s189] sm:$0xf]
          %v230 = vld [vmem:[%s189 + $0x4] sm:$0xf]
          %v231 = vld [vmem:[%s189 + $0x8] sm:$0xf]
          %v232 = vld [vmem:[%s189 + $0xc] sm:$0xf]
          %v233 = vld [vmem:[%s189 + $0x10] sm:$0xf]
          %v234 = vld [vmem:[%s189 + $0x14] sm:$0xf]
          %v235 = vld [vmem:[%s189 + $0x18] sm:$0xf]
          %v236 = vld [vmem:[%s189 + $0x1c] sm:$0xf]
          %v237 = vld [vmem:[%s189 + $0x20] sm:$0xf]
          %v238 = vld [vmem:[%s189 + $0x24] sm:$0xf]
          %v239 = vld [vmem:[%s189 + $0x28] sm:$0xf]
          %v240 = vld [vmem:[%s189 + $0x2c] sm:$0xf]
          %v241 = vld [vmem:[%s189 + $0x30] sm:$0xf]
          %v242 = vld [vmem:[%s189 + $0x34] sm:$0xf]
          %v243 = vld [vmem:[%s189 + $0x38] sm:$0xf]
          %v244 = vld [vmem:[%s189 + $0x3c] sm:$0xf]
          %v261 = vunpack.c.l.b16 %v229
          %v262 = vunpack.c.l.b16 %v230
          %v263 = vunpack.c.l.b16 %v231
          %v264 = vunpack.c.l.b16 %v232
          %v265 = vunpack.c.l.b16 %v233
          %v266 = vunpack.c.l.b16 %v234
          %v267 = vunpack.c.l.b16 %v235
          %v268 = vunpack.c.l.b16 %v236
          %v269 = vunpack.c.l.b16 %v237
          %v270 = vunpack.c.l.b16 %v238
          %v271 = vunpack.c.l.b16 %v239
          %v272 = vunpack.c.l.b16 %v240
          %v273 = vunpack.c.l.b16 %v241
          %v274 = vunpack.c.l.b16 %v242
          %v275 = vunpack.c.l.b16 %v243
          %v276 = vunpack.c.l.b16 %v244
          %v277 = vpack.c.b16 %v262, %v261
          %v278 = vpack.c.b16 %v264, %v263
          %v279 = vpack.c.b16 %v266, %v265
          %v280 = vpack.c.b16 %v268, %v267
          %v281 = vpack.c.b16 %v270, %v269
          %v282 = vpack.c.b16 %v272, %v271
          %v283 = vpack.c.b16 %v274, %v273
          %v284 = vpack.c.b16 %v276, %v275
          %293 = vmatprep.subr.bf16.mxu0 0
          %294 = vmatpush1.bf16.msra.mxu0 %v277
          %295 = vmatprep.subr.bf16.mxu0 0
          %296 = vmatpush1.bf16.msra.mxu0 %v278
          %297 = vmatprep.subr.bf16.mxu0 0
          %298 = vmatpush1.bf16.msra.mxu0 %v279
          %299 = vmatprep.subr.bf16.mxu0 0
          %300 = vmatpush1.bf16.msra.mxu0 %v280
          %301 = vmatprep.subr.bf16.mxu0 0
          %302 = vmatpush1.bf16.msra.mxu0 %v281
          %303 = vmatprep.subr.bf16.mxu0 0
          %304 = vmatpush1.bf16.msra.mxu0 %v282
          %305 = vmatprep.subr.bf16.mxu0 0
          %306 = vmatpush1.bf16.msra.mxu0 %v283
          %307 = vmatprep.subr.bf16.mxu0 0
          %308 = vmatpush1.bf16.msra.mxu0 %v284
          %309 = vmatprep.subr.bf16.mxu0 0
          %310 = vmatpush1.bf16.msra.mxu0 0
          %311 = vmatprep.subr.bf16.mxu0 0
          %312 = vmatpush1.bf16.msra.mxu0 0
          %313 = vmatprep.subr.bf16.mxu0 0
          %314 = vmatpush1.bf16.msra.mxu0 0
          %315 = vmatprep.subr.bf16.mxu0 0
          %316 = vmatpush1.bf16.msra.mxu0 0
          %317 = vmatprep.subr.bf16.mxu0 0
          %318 = vmatpush1.bf16.msra.mxu0 0
          %319 = vmatprep.subr.bf16.mxu0 0
          %320 = vmatpush1.bf16.msra.mxu0 0
          %321 = vmatprep.subr.bf16.mxu0 0
          %322 = vmatpush1.bf16.msra.mxu0 0
          %323 = vmatprep.subr.bf16.mxu0 0
          %324 = vmatpush1.bf16.msra.mxu0 0
          %325 = vmatprep.mubr.bf16.mxu0 0
          %326 = vmatmul.mubr.bf16.gmra.mrb[0].mxu0 %v228
          %v327 = vpop.f32.mrb[0].mxu0
          %v328 = vadd.f32 0.0, %v327
          %v329 = vpop.f32.mrb[0].mxu0
          %v330 = vpop.f32.mrb[0].mxu0
          %v331 = vpop.f32.mrb[0].mxu0
          %332 = vdwg.mxu0
          %v333 = vadd.f32 %v227, %v328
          %334 = vst [vmem:[#allocation2] sm:$0xff] %v333
        $region44: #{tpu_custom_call.1} parent=27 // pred_fallthru
          _
        %p335 = scmp.eq.s32.totalorder %s27, 15
        // Predicated region
        $region45: #{tpu_custom_call.1} parent=27 // pred_check
          %p336 = pneg %p335
        $region46: #{tpu_custom_call.1} parent=27 // pred_check_branch
          %338 = sbr.rel (%p336) target = $region48
        $region47: #{tpu_custom_call.1} parent=27 // pred_region
          %v339 = vld [vmem:[#allocation2] sm:$0xff]
          %340 = vst [vmem:[%s214] sm:$0xff] %v339
        $region48: #{tpu_custom_call.1} parent=27 // pred_fallthru
          _
        %s341 = sand.u32 %s96, 1
        %s342 = scalar_lea.sflag [#allocation5], %s341
        %s343 = sand.u32 %s96, 1
        %s344 = smul.addr %s343, 8
        %s345 = scalar_lea.vmem [#allocation8], %s344
        // Predicated region
        $region49: #{tpu_custom_call.1} parent=27 // pred_check
          %p346 = pneg %p106
        $region50: #{tpu_custom_call.1} parent=27 // pred_check_branch
          %348 = sbr.rel (%p346) target = $region52
        $region51: #{tpu_custom_call.1} parent=27 // pred_region
          %s350 = ssub.s32 128, 128
          %351 = vsyncadd %s342, %s350
          %s352 = smul.addr %s26, 128
          %s353 = scalar_lea.hbm %s2, %s352
          %s355 = sshll.u32 %s345, 4
          %s356 = int_to_ptr.vmem [resolvable:$true] %s355
          %358 = dma.vmem_to_hbm [thread:$0]  %s356, 128, %s353, %s342
        $region52: #{tpu_custom_call.1} parent=27 // pred_fallthru
          _
      $region28: #{tpu_custom_call.1} parent=5 // pred_fallthru
        _
      %p359 = scmp.le.s32.totalorder 2, %s17
      // Predicated region
      $region53: #{tpu_custom_call.1} parent=5 // pred_check
        %p360 = pneg %p359
      $region54: #{tpu_custom_call.1} parent=5 // pred_check_branch
        %362 = sbr.rel (%p360) target = $region56
      $region55: #{tpu_custom_call.1} parent=5 // pred_region
        %s363 = ssub.s32 %s17, 2
        // Predicated region
        $region57: #{tpu_custom_call.1} parent=55 // pred_check
          %p364 = pneg %p112
        $region58: #{tpu_custom_call.1} parent=55 // pred_check_branch
          %366 = sbr.rel (%p364) target = $region60
        $region59: #{tpu_custom_call.1} parent=55 // pred_region
          %s367 = sand.u32 %s97, 1
          %s368 = scalar_lea.sflag [#allocation5], %s367
          %s369 = sand.u32 %s97, 1
          %s370 = smul.addr %s369, 8
          %s371 = scalar_lea.vmem [#allocation8], %s370
          %372 = dma.done %s368, 128
        $region60: #{tpu_custom_call.1} parent=55 // pred_fallthru
          _
      $region56: #{tpu_custom_call.1} parent=5 // pred_fallthru
        _
    $region6: #{tpu_custom_call.1} parent=1 // loop_footer
      %s21 = sadd.s32 1, %s17
    $region7: #{tpu_custom_call.1} parent=1 // loop_footer_branch
      %16 = sbr.rel target = $region3
    $region8: #{tpu_custom_call.1} parent=1 // loop_exit
      _
    %373 = vsyncpa [#allocation4], 1
    %s374 = scalar_lea.sflag [#allocation4], 1
    %375 = vsyncpa %s374, 1
    %376 = vsyncpa [#allocation7], 1
    %s377 = scalar_lea.sflag [#allocation7], 1
    %378 = vsyncpa %s377, 1
    %379 = vsyncpa [#allocation5], 1
    %s380 = scalar_lea.sflag [#allocation5], 1
    %381 = vsyncpa %s380, 1

</llo_original>
